<compile_context>
chip_gen: v5e
topology: v5e:2x2
jax: 0.10.0
libtpu: 0.0.40
codegen_flags: <defaults>
</compile_context>

<pallas_src>
import jax
import jax.numpy as jnp
from jax.experimental import pallas as pl
from jax.experimental.pallas import tpu as pltpu


def _round_up(x, m):
    return ((x + m - 1) // m) * m


# ----------------------------------------------------------------------------
# Kernel 1: tiled min/max reduction over the raw 3-D grid (early-exit test).
#   Blocks are (BX, dimY, dimZ): trailing dims equal the full array dims, so
#   the (8, 128) divisibility rule is satisfied for any grid size and there is
#   no flatten / pad pre-pass.  Each block writes a (1, dimY, dimZ) partial
#   min/max; the final (tiny) reduction happens in the wrapper.
# ----------------------------------------------------------------------------
def _make_minmax_kernel(dim_x, bx):
    def kernel(x_ref, min_ref, max_ref):
        x = x_ref[...]
        if dim_x % bx:
            # mask out-of-bounds rows of the boundary block
            row = (jax.lax.broadcasted_iota(jnp.int32, x.shape, 0)
                   + pl.program_id(0) * bx)
            valid = row < dim_x
            x_min = jnp.where(valid, x, jnp.inf)
            x_max = jnp.where(valid, x, -jnp.inf)
        else:
            x_min = x
            x_max = x
        min_ref[...] = jnp.min(x_min, axis=0, keepdims=True)
        max_ref[...] = jnp.max(x_max, axis=0, keepdims=True)

    return kernel


def grid_minmax(grid):
    dim_x, dim_y, dim_z = grid.shape
    bytes_per_row = dim_y * dim_z * 4
    bx = max(1, min(dim_x, (4 * 1024 * 1024) // max(bytes_per_row, 1)))
    nb = pl.cdiv(dim_x, bx)

    mins, maxs = pl.pallas_call(
        _make_minmax_kernel(dim_x, bx),
        out_shape=(
            jax.ShapeDtypeStruct((nb, dim_y, dim_z), jnp.float32),
            jax.ShapeDtypeStruct((nb, dim_y, dim_z), jnp.float32),
        ),
        grid=(nb,),
        in_specs=[pl.BlockSpec((bx, dim_y, dim_z), lambda i: (i, 0, 0))],
        out_specs=(
            pl.BlockSpec((1, dim_y, dim_z), lambda i: (i, 0, 0)),
            pl.BlockSpec((1, dim_y, dim_z), lambda i: (i, 0, 0)),
        ),
        compiler_params=pltpu.CompilerParams(
            dimension_semantics=("parallel",)),
    )(grid)
    return jnp.min(mins), jnp.max(maxs)


# ----------------------------------------------------------------------------
# Kernel 2: per-cell DMC dual-vertex computation, tiled over X.
#   Auto-pipelined inputs from the padded point volume (PX, BYA, BZA):
#     body block (TX, BYA, BZA)  at block (i, 0, 0)
#     halo row   (1,  BYA, BZA)  at row   i*TX + TX   (+X neighbor row)
#   Lane-dense outputs per X block (TX, BY, BZ) with BY % 8 == 0, BZ % 128 == 0:
#     fx, fy, fz  f32  fractional dual-vertex offset inside the cell, in [0, 1]
#     cnt         i8   number of iso-crossed cell edges (0..12)
#     sign        i8   inside flag (value < isovalue) at the cell's base point
# ----------------------------------------------------------------------------
_TX = 8  # cells per X block (TODO(synk): tune per chip; 16-32 is better on v6e)


def _make_dmc_cell_kernel(isovalue):
    iso = float(isovalue)

    def kernel(body_ref, halo_ref, fx_ref, fy_ref, fz_ref, cnt_ref, sign_ref):
        tx, by, bz = fx_ref.shape
        f32 = jnp.float32

        # (TX+1, BY+1, BZ+1) point slab: body rows + one +X halo row.
        slab = jnp.concatenate([body_ref[...], halo_ref[...]], axis=0)

        # 4 corner point slabs in the (Y, Z) plane, each (TX+1, BY, BZ).
        # The +1 offsets are in-bounds thanks to the single row/lane of point
        # headroom; corner offsets along X are cheap major-axis slices.
        q = {}
        s = {}
        for dy in (0, 1):
            for dz in (0, 1):
                v = slab[:, dy:dy + by, dz:dz + bz]
                q[(dy, dz)] = v
                s[(dy, dz)] = v < iso          # "inside" := value < isovalue

        sign_ref[...] = s[(0, 0)][:tx].astype(jnp.int8)

        zero = jnp.zeros((tx, by, bz), f32)
        sum_x, sum_y, sum_z, cnt = zero, zero, zero, zero

        def edge_terms(pa, pb, sa, sb):
            cross = sa != sb
            d = pb - pa
            # Guard tiny |d| so the approx reciprocal can never yield inf/NaN.
            d = jnp.where(jnp.abs(d) < 1e-12,
                          jnp.where(d < 0, -1e-12, 1e-12), d)
            d = jnp.where(cross, d, f32(1.0))
            t = jnp.clip((iso - pa) * pl.reciprocal(d, approx=True), 0.0, 1.0)
            c = cross.astype(f32)
            return c, c * t

        # X-direction edges: 4 per cell, one per (dy, dz) corner column.
        for dy in (0, 1):
            for dz in (0, 1):
                c, ct = edge_terms(q[(dy, dz)][:tx], q[(dy, dz)][1:],
                                   s[(dy, dz)][:tx], s[(dy, dz)][1:])
                cnt = cnt + c
                sum_x = sum_x + ct
                if dy:
                    sum_y = sum_y + c
                if dz:
                    sum_z = sum_z + c

        # Y-direction edges: interpolation computed once per dz, shared across dx.
        for dz in (0, 1):
            c_f, ct_f = edge_terms(q[(0, dz)], q[(1, dz)], s[(0, dz)], s[(1, dz)])
            for dx in (0, 1):
                c, ct = c_f[dx:dx + tx], ct_f[dx:dx + tx]
                cnt = cnt + c
                sum_y = sum_y + ct
                if dx:
                    sum_x = sum_x + c
                if dz:
                    sum_z = sum_z + c

        # Z-direction edges: interpolation computed once per dy, shared across dx.
        for dy in (0, 1):
            c_f, ct_f = edge_terms(q[(dy, 0)], q[(dy, 1)], s[(dy, 0)], s[(dy, 1)])
            for dx in (0, 1):
                c, ct = c_f[dx:dx + tx], ct_f[dx:dx + tx]
                cnt = cnt + c
                sum_z = sum_z + ct
                if dx:
                    sum_x = sum_x + c
                if dy:
                    sum_y = sum_y + c

        inv = pl.reciprocal(jnp.maximum(cnt, 1.0), approx=True)
        fx_ref[...] = sum_x * inv
        fy_ref[...] = sum_y * inv
        fz_ref[...] = sum_z * inv
        cnt_ref[...] = cnt.astype(jnp.int8)

    return kernel


def dmc_cells(padded, isovalue, tx, by, bz):
    pxp, bya, bza = padded.shape
    cxp = pxp - 1                      # cells computed along X
    nx = cxp // tx
    cell_shape = (cxp, by, bz)
    out_block = pl.BlockSpec((tx, by, bz), lambda i: (i, 0, 0))

    return pl.pallas_call(
        _make_dmc_cell_kernel(isovalue),
        out_shape=(
            jax.ShapeDtypeStruct(cell_shape, jnp.float32),
            jax.ShapeDtypeStruct(cell_shape, jnp.float32),
            jax.ShapeDtypeStruct(cell_shape, jnp.float32),
            jax.ShapeDtypeStruct(cell_shape, jnp.int8),
            jax.ShapeDtypeStruct(cell_shape, jnp.int8),
        ),
        grid=(nx,),
        in_specs=[
            # body rows [i*TX, i*TX + TX)
            pl.BlockSpec((tx, bya, bza), lambda i: (i, 0, 0)),
            # +X halo row at element index i*TX + TX (block size 1 along X)
            pl.BlockSpec((1, bya, bza), lambda i: (i * tx + tx, 0, 0)),
        ],
        out_specs=(out_block,) * 5,
        compiler_params=pltpu.CompilerParams(
            dimension_semantics=("parallel",),
            vmem_limit_bytes=48 * 1024 * 1024,
        ),
    )(padded, padded)


# ----------------------------------------------------------------------------
# Forward pass (mirrors DMC.forward).  Not jitted: output sizes are data
# dependent, exactly like the original PyTorch module.
# ----------------------------------------------------------------------------
def dmc_forward(grid, isovalue=0.0, return_quads=False, normalize=True):
    grid = jnp.asarray(grid, jnp.float32)
    dimX, dimY, dimZ = grid.shape

    gmin, gmax = grid_minmax(grid)
    if float(gmin) >= isovalue or float(gmax) <= isovalue:
        return (jnp.zeros((0, 3), jnp.float32), jnp.zeros((0, 4), jnp.int32))

    # Lane-dense padded point volume.  Real data sits at [1:dim+1] along each
    # axis; everything else is isovalue + 1 (the module's F.pad constant), so
    # padded cells never cross the isosurface (cnt == 0) and drop out of the
    # active-cell mask without any cropping.
    tx = _TX
    cxp = _round_up(dimX + 2, tx)       # cells computed along X
    pxp = cxp + 1                       # points along X
    by = _round_up(dimY + 2, 8)         # cell extent along Y (sublane-dense)
    bz = _round_up(dimZ + 2, 128)       # cell extent along Z (lane-dense)
    bya, bza = by + 1, bz + 1           # point extents (+1 row/lane headroom)

    pad_val = float(isovalue) + 1.0
    padded = jnp.pad(
        grid,
        ((1, pxp - dimX - 1), (1, bya - dimY - 1), (1, bza - dimZ - 1)),
        mode="constant", constant_values=pad_val)

    fx, fy, fz, cnt, sign = dmc_cells(padded, isovalue, tx, by, bz)

    # --- compact active cells into a vertex list (eager, data-dependent) -----
    cnt_flat = cnt.reshape(-1)
    active = cnt_flat > 0
    cell2vid_flat = jnp.where(active,
                              jnp.cumsum(active.astype(jnp.int32)) - 1, -1)
    vid_flat = jnp.where(active)[0]                       # concrete sizes

    ci = (vid_flat // (by * bz)).astype(jnp.float32)
    cj = ((vid_flat // bz) % by).astype(jnp.float32)
    ck = (vid_flat % bz).astype(jnp.float32)
    verts = jnp.stack([ci + fx.reshape(-1)[vid_flat],
                       cj + fy.reshape(-1)[vid_flat],
                       ck + fz.reshape(-1)[vid_flat]], axis=1)

    cell2vid = cell2vid_flat.reshape(cxp, by, bz)

    # --- quad connectivity: one quad per iso-crossed grid edge ---------------
    def edge_quads(cross, offsets, shift):
        idx = jnp.argwhere(cross)
        if idx.shape[0] == 0:
            return jnp.zeros((0, 4), jnp.int32)
        pt = idx + jnp.asarray(shift, jnp.int32)          # edge base point
        cols = []
        for off in offsets:
            c = pt + jnp.asarray(off, jnp.int32)          # adjacent cell coord
            cols.append(cell2vid[c[:, 0], c[:, 1], c[:, 2]])
        quad = jnp.stack(cols, axis=1).astype(jnp.int32)
        # orient by which side of the edge is "inside" (winding vs CUDA kernel
        # still unverified, see module-level TODO)
        flip = sign[pt[:, 0], pt[:, 1], pt[:, 2]] > 0
        return jnp.where(flip[:, None], quad, quad[:, ::-1])

    ex = sign[:-1, :, :] != sign[1:, :, :]
    ey = sign[:, :-1, :] != sign[:, 1:, :]
    ez = sign[:, :, :-1] != sign[:, :, 1:]

    qx = edge_quads(ex[:, 1:, 1:],
                    [(0, -1, -1), (0, 0, -1), (0, 0, 0), (0, -1, 0)], (0, 1, 1))
    qy = edge_quads(ey[1:, :, 1:],
                    [(-1, 0, -1), (-1, 0, 0), (0, 0, 0), (0, 0, -1)], (1, 0, 1))
    qz = edge_quads(ez[1:, 1:, :],
                    [(-1, -1, 0), (0, -1, 0), (0, 0, 0), (-1, 0, 0)], (1, 1, 0))
    quads = jnp.concatenate([qx, qy, qz], axis=0)

    # --- vertex post-processing (matches the PyTorch module) -----------------
    verts = verts - 1.0
    if normalize:
        verts = verts / (jnp.array([dimX, dimY, dimZ], jnp.float32) - 1.0)

    if return_quads:
        return verts, quads
    tris = jnp.concatenate([quads[:, [0, 1, 2]], quads[:, [0, 2, 3]]], axis=0)
    return verts, tris


class DMC:
    """Thin wrapper mirroring the PyTorch module interface (float32 only)."""

    def __init__(self, dtype=jnp.float32):
        self.dtype = dtype  # TODO(synk): float64 path not supported (x64 off).

    def __call__(self, grid, isovalue=0.0, return_quads=False, normalize=True):
        return dmc_forward(grid, isovalue, return_quads, normalize)

    forward = __call__


# ----------------------------------------------------------------------------
# Demo
# ----------------------------------------------------------------------------
if __name__ == "__main__":
    key = jax.random.PRNGKey(0)
    dim = 16
    # deterministic SDF of a sphere + tiny noise (crosses isovalue 0.0)
    lin = jnp.linspace(-1.0, 1.0, dim)
    xx, yy, zz = jnp.meshgrid(lin, lin, lin, indexing="ij")
    grid = jnp.sqrt(xx * xx + yy * yy + zz * zz) - 0.5
    grid = grid + 0.02 * jax.random.normal(key, (dim, dim, dim), jnp.float32)
    grid = grid.astype(jnp.float32)

    dmc = DMC()
    verts, tris = dmc(grid, isovalue=0.0, return_quads=False, normalize=True)
    jax.block_until_ready(verts)
    jax.block_until_ready(tris)

    assert verts.ndim == 2 and verts.shape[1] == 3
    assert tris.ndim == 2 and tris.shape[1] == 3
    assert verts.shape[0] > 0 and tris.shape[0] > 0
    assert bool(jnp.all(jnp.isfinite(verts)))
    assert bool(jnp.all((tris >= 0) & (tris < verts.shape[0])))

    verts_q, quads = dmc(grid, isovalue=0.0, return_quads=True, normalize=True)
    jax.block_until_ready(quads)
    assert quads.ndim == 2 and quads.shape[1] == 4
    assert bool(jnp.all((quads >= 0) & (quads < verts_q.shape[0])))

    print("KERNEL_OK")
</pallas_src>

<mosaic_0001>
module attributes {stable_mosaic.version = 11 : i64} {
  func.func @kernel(%arg0: i32, %arg1: memref<16x16x16xf32, #tpu.memory_space<vmem>>, %arg2: memref<1x16x16xf32, #tpu.memory_space<vmem>>, %arg3: memref<1x16x16xf32, #tpu.memory_space<vmem>>) attributes {dimension_semantics = [#tpu.dimension_semantics<parallel>], iteration_bounds = array<i64: 1>, scalar_prefetch = 0 : i64, scratch_operands = 0 : i64, tpu.core_type = #tpu.core_type<tc>, window_params = [{transform_indices = @transform_0, window_bounds = array<i64: 16, 16, 16>}, {transform_indices = @transform_1, window_bounds = array<i64: 1, 16, 16>}, {transform_indices = @transform_2, window_bounds = array<i64: 1, 16, 16>}]} {
    %c0 = arith.constant 0 : index
    %c0_0 = arith.constant 0 : index
    %c0_1 = arith.constant 0 : index
    %0 = vector.load %arg1[%c0, %c0_0, %c0_1] : memref<16x16x16xf32, #tpu.memory_space<vmem>>, vector<16x16x16xf32>
    %cst = arith.constant dense<0x7F800000> : vector<16x16xf32>
    %1 = vector.multi_reduction <minimumf>, %0, %cst [0] : vector<16x16x16xf32> to vector<16x16xf32>
    %2 = vector.shape_cast %1 : vector<16x16xf32> to vector<1x16x16xf32>
    %c0_2 = arith.constant 0 : index
    %c0_3 = arith.constant 0 : index
    %c0_4 = arith.constant 0 : index
    %3 = vector.load %arg2[%c0_2, %c0_3, %c0_4] : memref<1x16x16xf32, #tpu.memory_space<vmem>>, vector<1x16x16xf32>
    tpu.vector_store %arg2[%c0_2, %c0_3, %c0_4], %2 {strides = array<i32>} : memref<1x16x16xf32, #tpu.memory_space<vmem>>, vector<1x16x16xf32>,
    %cst_5 = arith.constant dense<0xFF800000> : vector<16x16xf32>
    %4 = vector.multi_reduction <maximumf>, %0, %cst_5 [0] : vector<16x16x16xf32> to vector<16x16xf32>
    %5 = vector.shape_cast %4 : vector<16x16xf32> to vector<1x16x16xf32>
    %c0_6 = arith.constant 0 : index
    %c0_7 = arith.constant 0 : index
    %c0_8 = arith.constant 0 : index
    %6 = vector.load %arg3[%c0_6, %c0_7, %c0_8] : memref<1x16x16xf32, #tpu.memory_space<vmem>>, vector<1x16x16xf32>
    tpu.vector_store %arg3[%c0_6, %c0_7, %c0_8], %5 {strides = array<i32>} : memref<1x16x16xf32, #tpu.memory_space<vmem>>, vector<1x16x16xf32>,
    return
  }
  func.func @transform_0(%arg0: i32) -> (i32, i32, i32) {
    %c0_i32 = arith.constant 0 : i32
    %c0_i32_0 = arith.constant 0 : i32
    %c0_i32_1 = arith.constant 0 : i32
    return %arg0, %c0_i32, %c0_i32_0 : i32, i32, i32
  }
  func.func @transform_1(%arg0: i32) -> (i32, i32, i32) {
    %c0_i32 = arith.constant 0 : i32
    %c0_i32_0 = arith.constant 0 : i32
    %c0_i32_1 = arith.constant 0 : i32
    return %arg0, %c0_i32, %c0_i32_0 : i32, i32, i32
  }
  func.func @transform_2(%arg0: i32) -> (i32, i32, i32) {
    %c0_i32 = arith.constant 0 : i32
    %c0_i32_0 = arith.constant 0 : i32
    %c0_i32_1 = arith.constant 0 : i32
    return %arg0, %c0_i32, %c0_i32_0 : i32, i32, i32
  }
}

</mosaic_0001>

<llo_original>
// kernel: tpu_custom_call.1
$region0: #{tpu_custom_call.1}
  #allocation0 [shape = 'u32[]', space=smem, size = 0x4, offset = 0x4, fixed_abs, tag = 'smem constant byte address 0x4 - core index']
  #allocation1 [shape = 'u32[72,128]{1,0:T(1,128)}', space=vmem, size = 0x9000, scoped, tag = 'internal scratch']
  %s0 = inlined_call_operand.hbm [shape: f32[16,16,16], index: 0, kind: input, shape index: {}]
  %s1 = inlined_call_operand.hbm [shape: f32[1,16,16], index: 1, kind: output, shape index: {0}]
  %s2 = inlined_call_operand.hbm [shape: f32[1,16,16], index: 2, kind: output, shape index: {1}]
  %3 = xla_tuple %s1, %s2
  %s4 = sld [smem:[#allocation0]]
  $region26: #{tpu_custom_call.1} parent=0
    _
  %s6 = ssub.s32 1, %s4
  %s7 = scalar_select 0, %s6, %s4
  $region1: #{tpu_custom_call.1} parent=0
    #allocation2 [shape = 'u8[131072]{0}', space=vmem, size = 0x20000, scoped, tag = 'input window, operand 0, single buffered']
    #allocation3 [shape = 's32[1]{0}', space=sflag, size = 0x4, scoped, tag = 'scoped memory for tpu_custom_call.1']
    #allocation4 [shape = 's32[1]{0}', space=sflag, size = 0x4, scoped, tag = 'scoped memory for tpu_custom_call.1']
    #allocation5 [shape = 'u8[8192]{0}', space=vmem, size = 0x2000, scoped, tag = 'output window, operand 0, single buffered']
    #allocation6 [shape = 'u8[8192]{0}', space=vmem, size = 0x2000, scoped, tag = 'output window, operand 1, single buffered']
    #allocation7 [shape = 's32[1]{0}', space=sflag, size = 0x4, scoped, tag = 'scoped memory for tpu_custom_call.1']
    %8 = vsyncpa [#allocation3], 0
    %9 = vsyncpa [#allocation4], 0
    %10 = vsyncpa [#allocation7], 0
    // Predicated region
    $region2: #{tpu_custom_call.1} parent=1 // pred_check
      _
    $region3: #{tpu_custom_call.1} parent=1 // pred_check_branch
      %12 = sbr.rel (0) target = $region5
    $region4: #{tpu_custom_call.1} parent=1 // pred_region
      %14 = vsyncadd [#allocation3], 0
      %s15 = sshll.u32 %s0, 4
      %s16 = int_to_ptr.hbm [resolvable:$true] %s15
      %s17 = sshll.u32 [#allocation2], 4
      %s18 = int_to_ptr.vmem [resolvable:$true] %s17
      %23 = dma.hbm_to_vmem [thread:$0]  %s16, 4096, %s18, [#allocation3], 128, 128, 8
    $region5: #{tpu_custom_call.1} parent=1 // pred_fallthru
      _
    // Predicated region
    $region6: #{tpu_custom_call.1} parent=1 // pred_check
      _
    $region7: #{tpu_custom_call.1} parent=1 // pred_check_branch
      %25 = sbr.rel (0) target = $region9
    $region8: #{tpu_custom_call.1} parent=1 // pred_region
      %27 = dma.done [#allocation3], 4096
    $region9: #{tpu_custom_call.1} parent=1 // pred_fallthru
      _
    %v28 = vld [vmem:[#allocation2] sm:$0xff]
    %v29 = vld [vmem:[#allocation2 + $0x8] sm:$0xff]
    %v30 = vld [vmem:[#allocation2 + $0x10] sm:$0xff]
    %v31 = vld [vmem:[#allocation2 + $0x18] sm:$0xff]
    %v32 = vld [vmem:[#allocation2 + $0x20] sm:$0xff]
    %v33 = vld [vmem:[#allocation2 + $0x28] sm:$0xff]
    %v34 = vld [vmem:[#allocation2 + $0x30] sm:$0xff]
    %v35 = vld [vmem:[#allocation2 + $0x38] sm:$0xff]
    %v36 = vld [vmem:[#allocation2 + $0x40] sm:$0xff]
    %v37 = vld [vmem:[#allocation2 + $0x48] sm:$0xff]
    %v38 = vld [vmem:[#allocation2 + $0x50] sm:$0xff]
    %v39 = vld [vmem:[#allocation2 + $0x58] sm:$0xff]
    %v40 = vld [vmem:[#allocation2 + $0x60] sm:$0xff]
    %v41 = vld [vmem:[#allocation2 + $0x68] sm:$0xff]
    %v42 = vld [vmem:[#allocation2 + $0x70] sm:$0xff]
    %v43 = vld [vmem:[#allocation2 + $0x78] sm:$0xff]
    %v44 = vld [vmem:[#allocation2 + $0x80] sm:$0xff]
    %v45 = vld [vmem:[#allocation2 + $0x88] sm:$0xff]
    %v46 = vld [vmem:[#allocation2 + $0x90] sm:$0xff]
    %v47 = vld [vmem:[#allocation2 + $0x98] sm:$0xff]
    %v48 = vld [vmem:[#allocation2 + $0xa0] sm:$0xff]
    %v49 = vld [vmem:[#allocation2 + $0xa8] sm:$0xff]
    %v50 = vld [vmem:[#allocation2 + $0xb0] sm:$0xff]
    %v51 = vld [vmem:[#allocation2 + $0xb8] sm:$0xff]
    %v52 = vld [vmem:[#allocation2 + $0xc0] sm:$0xff]
    %v53 = vld [vmem:[#allocation2 + $0xc8] sm:$0xff]
    %v54 = vld [vmem:[#allocation2 + $0xd0] sm:$0xff]
    %v55 = vld [vmem:[#allocation2 + $0xd8] sm:$0xff]
    %v56 = vld [vmem:[#allocation2 + $0xe0] sm:$0xff]
    %v57 = vld [vmem:[#allocation2 + $0xe8] sm:$0xff]
    %v58 = vld [vmem:[#allocation2 + $0xf0] sm:$0xff]
    %v59 = vld [vmem:[#allocation2 + $0xf8] sm:$0xff]
    %vm60 = vcmask 130048
    %v61 = vsel %vm60, %v28, inf
    %v62 = vsel %vm60, %v30, inf
    %v63 = vsel %vm60, %v32, inf
    %v64 = vmin.f32 %v61, %v63
    %v65 = vsel %vm60, %v34, inf
    %v66 = vmin.f32 %v62, %v65
    %v67 = vsel %vm60, %v36, inf
    %v68 = vmin.f32 %v64, %v67
    %v69 = vsel %vm60, %v38, inf
    %v70 = vmin.f32 %v66, %v69
    %v71 = vsel %vm60, %v40, inf
    %v72 = vmin.f32 %v68, %v71
    %v73 = vsel %vm60, %v42, inf
    %v74 = vmin.f32 %v70, %v73
    %v75 = vsel %vm60, %v44, inf
    %v76 = vmin.f32 %v72, %v75
    %v77 = vsel %vm60, %v46, inf
    %v78 = vmin.f32 %v74, %v77
    %v79 = vsel %vm60, %v48, inf
    %v80 = vmin.f32 %v76, %v79
    %v81 = vsel %vm60, %v50, inf
    %v82 = vmin.f32 %v78, %v81
    %v83 = vsel %vm60, %v52, inf
    %v84 = vmin.f32 %v80, %v83
    %v85 = vsel %vm60, %v54, inf
    %v86 = vmin.f32 %v82, %v85
    %v87 = vsel %vm60, %v56, inf
    %v88 = vmin.f32 %v84, %v87
    %v89 = vsel %vm60, %v58, inf
    %v90 = vmin.f32 %v86, %v89
    %v91 = vmin.f32 %v88, %v90
    %v92 = vsel %vm60, %v29, inf
    %v93 = vsel %vm60, %v31, inf
    %v94 = vsel %vm60, %v33, inf
    %v95 = vmin.f32 %v92, %v94
    %v96 = vsel %vm60, %v35, inf
    %v97 = vmin.f32 %v93, %v96
    %v98 = vsel %vm60, %v37, inf
    %v99 = vmin.f32 %v95, %v98
    %v100 = vsel %vm60, %v39, inf
    %v101 = vmin.f32 %v97, %v100
    %v102 = vsel %vm60, %v41, inf
    %v103 = vmin.f32 %v99, %v102
    %v104 = vsel %vm60, %v43, inf
    %v105 = vmin.f32 %v101, %v104
    %v106 = vsel %vm60, %v45, inf
    %v107 = vmin.f32 %v103, %v106
    %v108 = vsel %vm60, %v47, inf
    %v109 = vmin.f32 %v105, %v108
    %v110 = vsel %vm60, %v49, inf
    %v111 = vmin.f32 %v107, %v110
    %v112 = vsel %vm60, %v51, inf
    %v113 = vmin.f32 %v109, %v112
    %v114 = vsel %vm60, %v53, inf
    %v115 = vmin.f32 %v111, %v114
    %v116 = vsel %vm60, %v55, inf
    %v117 = vmin.f32 %v113, %v116
    %v118 = vsel %vm60, %v57, inf
    %v119 = vmin.f32 %v115, %v118
    %v120 = vsel %vm60, %v59, inf
    %v121 = vmin.f32 %v117, %v120
    %v122 = vmin.f32 %v119, %v121
    %123 = vst.msk [vmem:[#allocation5] sm:$0xff] %vm60, %v91
    %124 = vst.msk [vmem:[#allocation5 + $0x8] sm:$0xff] %vm60, %v122
    %v125 = vsel %vm60, %v28, -inf
    %v126 = vsel %vm60, %v30, -inf
    %v127 = vsel %vm60, %v32, -inf
    %v128 = vmax.f32 %v125, %v127
    %v129 = vsel %vm60, %v34, -inf
    %v130 = vmax.f32 %v126, %v129
    %v131 = vsel %vm60, %v36, -inf
    %v132 = vmax.f32 %v128, %v131
    %v133 = vsel %vm60, %v38, -inf
    %v134 = vmax.f32 %v130, %v133
    %v135 = vsel %vm60, %v40, -inf
    %v136 = vmax.f32 %v132, %v135
    %v137 = vsel %vm60, %v42, -inf
    %v138 = vmax.f32 %v134, %v137
    %v139 = vsel %vm60, %v44, -inf
    %v140 = vmax.f32 %v136, %v139
    %v141 = vsel %vm60, %v46, -inf
    %v142 = vmax.f32 %v138, %v141
    %v143 = vsel %vm60, %v48, -inf
    %v144 = vmax.f32 %v140, %v143
    %v145 = vsel %vm60, %v50, -inf
    %v146 = vmax.f32 %v142, %v145
    %v147 = vsel %vm60, %v52, -inf
    %v148 = vmax.f32 %v144, %v147
    %v149 = vsel %vm60, %v54, -inf
    %v150 = vmax.f32 %v146, %v149
    %v151 = vsel %vm60, %v56, -inf
    %v152 = vmax.f32 %v148, %v151
    %v153 = vsel %vm60, %v58, -inf
    %v154 = vmax.f32 %v150, %v153
    %v155 = vmax.f32 %v152, %v154
    %v156 = vsel %vm60, %v29, -inf
    %v157 = vsel %vm60, %v31, -inf
    %v158 = vsel %vm60, %v33, -inf
    %v159 = vmax.f32 %v156, %v158
    %v160 = vsel %vm60, %v35, -inf
    %v161 = vmax.f32 %v157, %v160
    %v162 = vsel %vm60, %v37, -inf
    %v163 = vmax.f32 %v159, %v162
    %v164 = vsel %vm60, %v39, -inf
    %v165 = vmax.f32 %v161, %v164
    %v166 = vsel %vm60, %v41, -inf
    %v167 = vmax.f32 %v163, %v166
    %v168 = vsel %vm60, %v43, -inf
    %v169 = vmax.f32 %v165, %v168
    %v170 = vsel %vm60, %v45, -inf
    %v171 = vmax.f32 %v167, %v170
    %v172 = vsel %vm60, %v47, -inf
    %v173 = vmax.f32 %v169, %v172
    %v174 = vsel %vm60, %v49, -inf
    %v175 = vmax.f32 %v171, %v174
    %v176 = vsel %vm60, %v51, -inf
    %v177 = vmax.f32 %v173, %v176
    %v178 = vsel %vm60, %v53, -inf
    %v179 = vmax.f32 %v175, %v178
    %v180 = vsel %vm60, %v55, -inf
    %v181 = vmax.f32 %v177, %v180
    %v182 = vsel %vm60, %v57, -inf
    %v183 = vmax.f32 %v179, %v182
    %v184 = vsel %vm60, %v59, -inf
    %v185 = vmax.f32 %v181, %v184
    %v186 = vmax.f32 %v183, %v185
    %187 = vst.msk [vmem:[#allocation6] sm:$0xff] %vm60, %v155
    %188 = vst.msk [vmem:[#allocation6 + $0x8] sm:$0xff] %vm60, %v186
    // Predicated region
    $region10: #{tpu_custom_call.1} parent=1 // pred_check
      _
    $region11: #{tpu_custom_call.1} parent=1 // pred_check_branch
      %190 = sbr.rel (0) target = $region13
    $region12: #{tpu_custom_call.1} parent=1 // pred_region
      %192 = vsyncadd [#allocation4], 0
      %s193 = sshll.u32 [#allocation5], 4
      %s194 = int_to_ptr.vmem [resolvable:$true] %s193
      %s195 = sshll.u32 %s1, 4
      %s196 = int_to_ptr.hbm [resolvable:$true] %s195
      %201 = dma.vmem_to_hbm [thread:$0]  %s194, 256, %s196, [#allocation4], 128, 128, 8
    $region13: #{tpu_custom_call.1} parent=1 // pred_fallthru
      _
    // Predicated region
    $region14: #{tpu_custom_call.1} parent=1 // pred_check
      _
    $region15: #{tpu_custom_call.1} parent=1 // pred_check_branch
      %203 = sbr.rel (0) target = $region17
    $region16: #{tpu_custom_call.1} parent=1 // pred_region
      %205 = vsyncadd [#allocation7], 0
      %s206 = sshll.u32 [#allocation6], 4
      %s207 = int_to_ptr.vmem [resolvable:$true] %s206
      %s208 = sshll.u32 %s2, 4
      %s209 = int_to_ptr.hbm [resolvable:$true] %s208
      %214 = dma.vmem_to_hbm [thread:$0]  %s207, 256, %s209, [#allocation7], 128, 128, 8
    $region17: #{tpu_custom_call.1} parent=1 // pred_fallthru
      _
    // Predicated region
    $region18: #{tpu_custom_call.1} parent=1 // pred_check
      _
    $region19: #{tpu_custom_call.1} parent=1 // pred_check_branch
      %216 = sbr.rel (0) target = $region21
    $region20: #{tpu_custom_call.1} parent=1 // pred_region
      %218 = dma.done [#allocation4], 256
    $region21: #{tpu_custom_call.1} parent=1 // pred_fallthru
      _
    // Predicated region
    $region22: #{tpu_custom_call.1} parent=1 // pred_check
      _
    $region23: #{tpu_custom_call.1} parent=1 // pred_check_branch
      %220 = sbr.rel (0) target = $region25
    $region24: #{tpu_custom_call.1} parent=1 // pred_region
      %222 = dma.done [#allocation7], 256
    $region25: #{tpu_custom_call.1} parent=1 // pred_fallthru
      _
    %223 = vsyncpa [#allocation3], 1
    %224 = vsyncpa [#allocation4], 1
    %225 = vsyncpa [#allocation7], 1

</llo_original>
